<compile_context>
chip_gen: v7x
topology: tpu7x:2x2x1
jax: 0.10.0
libtpu: 0.0.40
codegen_flags: <defaults>
</compile_context>

<pallas_src>
import jax
import jax.numpy as jnp
from jax.experimental import pallas as pl
from jax.experimental.pallas import tpu as pltpu


def _round_up(x, m):
    return ((x + m - 1) // m) * m


def _discriminator_kernel(img_ref, emb_ref,
                          w1i_ref, w1e_ref, b1_ref,
                          w2_ref, b2_ref,
                          w3_ref, b3_ref,
                          w4_ref, b4_ref,
                          out_ref):
    """One batch tile of the fused 4-layer MLP discriminator."""

    def leaky_relu(v):
        return jnp.where(v > 0, v, 0.2 * v)

    # Activations arrive (ideally) already bf16; astype is a no-op in that case.
    img = img_ref[...].astype(jnp.bfloat16)           # (TB, img_dim)
    emb = emb_ref[...].astype(jnp.bfloat16)           # (TB, n_classes)

    # Layer 1: concat(img, emb) @ W1  ==  img @ W1_img + emb @ W1_emb
    h = (jnp.dot(img, w1i_ref[...], preferred_element_type=jnp.float32)
         + jnp.dot(emb, w1e_ref[...], preferred_element_type=jnp.float32)
         + b1_ref[...])
    h = leaky_relu(h)

    # Layer 2: Linear(H -> H) + Dropout(identity at inference) + LeakyReLU
    h = jnp.dot(h.astype(jnp.bfloat16), w2_ref[...],
                preferred_element_type=jnp.float32) + b2_ref[...]
    h = leaky_relu(h)

    # Layer 3: Linear(H -> H) + Dropout(identity at inference) + LeakyReLU
    h = jnp.dot(h.astype(jnp.bfloat16), w3_ref[...],
                preferred_element_type=jnp.float32) + b3_ref[...]
    h = leaky_relu(h)

    # Layer 4: Linear(H -> 1) as VPU multiply + lane reduce, then Sigmoid.
    logit = jnp.sum(h * w4_ref[...], axis=-1, keepdims=True) + b4_ref[...]
    # Sigmoid: EUP exp + EUP approximate reciprocal (keeps the VALU slot clear).
    out_ref[...] = pl.reciprocal(1.0 + jnp.exp(-logit), approx=True)


def discriminator_forward(img, labels, params, *, block_b=1024):
    """Glue: NCHW flatten + embedding gather in XLA; fused MLP in Pallas.

    `img` should be supplied in bf16 by its producer (generator / data
    pipeline); the wrapper does NOT insert a standalone dtype cast, since that
    would be an extra full HBM pass over the dominant activation stream.
    """
    B = img.shape[0]
    img_flat = img.reshape(B, -1)                             # matches torch .view
    emb = params["embedding"][labels]                         # (B, n_classes)

    img_dim = img_flat.shape[1]
    n_classes = emb.shape[1]
    H = params["w2"].shape[0]

    # Batch tile: multiple of 16 (bf16 sublane packing; also fine for f32),
    # large enough to amortize the ~0.35 us per-grid-step overhead.
    TB = min(block_b, _round_up(B, 16))
    # Keep >=2 grid steps when the batch allows it so v7x's two TensorCores
    # both get work on the "parallel" batch axis (harmless on v5e/v6e).
    if B > 16 and _round_up(B, TB) == TB:
        TB = _round_up((TB + 1) // 2, 16)
    B_pad = _round_up(B, TB)
    if B_pad != B:
        pad = B_pad - B
        img_flat = jnp.pad(img_flat, ((0, pad), (0, 0)))
        emb = jnp.pad(emb, ((0, pad), (0, 0)))

    grid = (B_pad // TB,)

    def act_spec(cols):
        return pl.BlockSpec((TB, cols), lambda i: (i, 0))

    def const_spec(shape):
        # Same block every grid step -> single buffer (second buffer is waste).
        return pl.BlockSpec(shape, lambda i: (0, 0), pipeline_mode=pl.Buffered(1))

    args = (img_flat, emb,
            params["w1_img"], params["w1_emb"], params["b1"],
            params["w2"], params["b2"],
            params["w3"], params["b3"],
            params["w4"], params["b4"])

    in_specs = [act_spec(img_dim), act_spec(n_classes)]
    in_specs += [const_spec(a.shape) for a in args[2:]]

    # VMEM budget derived from the actual tile sizes; clamp so a tile that fits
    # v5e/v6e (128 MiB VMEM) cannot OOM v7x (64 MiB physical).
    weight_bytes = sum(int(a.size) * a.dtype.itemsize for a in args[2:])
    vmem_est = (2 * TB * img_dim * img_flat.dtype.itemsize    # dbl-buffered img tile
                + 2 * TB * n_classes * emb.dtype.itemsize     # dbl-buffered emb tile
                + weight_bytes                                 # single-buffered weights
                + 6 * TB * H * 4                               # f32/bf16 intermediates
                + 2 * TB * 4                                   # dbl-buffered output
                + (4 << 20))                                   # slack
    vmem_limit = int(min(48 << 20, max(32 << 20, vmem_est)))

    flops = 2 * B_pad * (img_dim * H + n_classes * H + 2 * H * H + H)
    bytes_accessed = (sum(int(a.size) * a.dtype.itemsize for a in args)
                      + B_pad * 4)

    out = pl.pallas_call(
        _discriminator_kernel,
        out_shape=jax.ShapeDtypeStruct((B_pad, 1), jnp.float32),
        grid=grid,
        in_specs=in_specs,
        out_specs=pl.BlockSpec((TB, 1), lambda i: (i, 0)),
        compiler_params=pltpu.CompilerParams(
            dimension_semantics=("parallel",),
            vmem_limit_bytes=vmem_limit,
        ),
        cost_estimate=pl.CostEstimate(
            flops=flops, transcendentals=B_pad, bytes_accessed=bytes_accessed),
    )(*args)
    return out[:B]


def init_params(key, *, n_classes, img_dim, n=32):
    """Deterministic synthetic init matching the PyTorch module's shapes.

    PyTorch Linear stores weight as (out, in); we store (in, out) so the kernel
    does x @ W directly. W1 is split row-wise into the image and embedding
    parts (concat order is [img | emb], matching the PyTorch forward).
    """
    H = n * 4
    d_in = n_classes + img_dim
    keys = jax.random.split(key, 9)

    def lin(kw, kb, fan_in, fan_out):
        bound = 1.0 / jnp.sqrt(jnp.float32(fan_in))
        w = jax.random.uniform(kw, (fan_in, fan_out), jnp.float32, -bound, bound)
        b = jax.random.uniform(kb, (1, fan_out), jnp.float32, -bound, bound)
        return w, b

    w1, b1 = lin(keys[0], keys[1], d_in, H)
    w2, b2 = lin(keys[2], keys[3], H, H)
    w3, b3 = lin(keys[4], keys[5], H, H)
    w4, b4 = lin(keys[6], keys[7], H, 1)
    embedding = jax.random.normal(keys[8], (n_classes, n_classes), jnp.float32)

    return {
        "embedding": embedding,
        # MXU weights stored bf16 (half the DMA bytes, full-rate MXU).
        "w1_img": w1[:img_dim].astype(jnp.bfloat16),
        "w1_emb": w1[img_dim:].astype(jnp.bfloat16),
        "b1": b1,
        "w2": w2.astype(jnp.bfloat16), "b2": b2,
        "w3": w3.astype(jnp.bfloat16), "b3": b3,
        # Final layer stays f32 as a (1, H) row: it runs on the VPU, not MXU.
        "w4": w4.T, "b4": b4,
    }


if __name__ == "__main__":
    # Small, self-consistent config:
    #   channels=4, img_size=16  -> img_shape = (4, 16, 16), prod = 1024
    #   n_classes=8, n=32        -> hidden = 128, D_in = 1032
    batch, channels, img_size, n_classes, n = 2, 4, 16, 8, 32
    img_dim = channels * img_size * img_size

    key = jax.random.PRNGKey(0)
    k_img, k_lab, k_par = jax.random.split(key, 3)

    # Image activations produced directly in bf16 upstream (the dominant HBM
    # stream into the kernel), per the perf review.
    img = jax.random.normal(k_img, (batch, channels, img_size, img_size),
                            jnp.bfloat16)
    labels = jax.random.randint(k_lab, (batch,), 0, n_classes, jnp.int32)
    params = init_params(k_par, n_classes=n_classes, img_dim=img_dim, n=n)

    validity = discriminator_forward(img, labels, params)
    validity = jax.block_until_ready(validity)

    assert validity.shape == (batch, 1)
    # approx reciprocal in the sigmoid -> allow a tiny epsilon around [0, 1].
    assert bool(jnp.all((validity >= -1e-5) & (validity <= 1.0 + 1e-5)))
    print("KERNEL_OK")
</pallas_src>

<mosaic_0001>
module attributes {stable_mosaic.version = 11 : i64} {
  func.func @_discriminator_kernel(%arg0: i32, %arg1: memref<16x1024xbf16, #tpu.memory_space<vmem>>, %arg2: memref<16x8xf32, #tpu.memory_space<vmem>>, %arg3: memref<1024x128xbf16, #tpu.memory_space<vmem>>, %arg4: memref<8x128xbf16, #tpu.memory_space<vmem>>, %arg5: memref<1x128xf32, #tpu.memory_space<vmem>>, %arg6: memref<128x128xbf16, #tpu.memory_space<vmem>>, %arg7: memref<1x128xf32, #tpu.memory_space<vmem>>, %arg8: memref<128x128xbf16, #tpu.memory_space<vmem>>, %arg9: memref<1x128xf32, #tpu.memory_space<vmem>>, %arg10: memref<1x128xf32, #tpu.memory_space<vmem>>, %arg11: memref<1x1xf32, #tpu.memory_space<vmem>>, %arg12: memref<16x1xf32, #tpu.memory_space<vmem>>) attributes {dimension_semantics = [#tpu.dimension_semantics<parallel>], iteration_bounds = array<i64: 1>, scalar_prefetch = 0 : i64, scratch_operands = 0 : i64, tpu.core_type = #tpu.core_type<tc>, window_params = [{transform_indices = @transform_0, window_bounds = array<i64: 16, 1024>}, {transform_indices = @transform_1, window_bounds = array<i64: 16, 8>}, {pipeline_mode = #tpu.pipeline_mode<synchronous>, transform_indices = @transform_2, window_bounds = array<i64: 1024, 128>}, {pipeline_mode = #tpu.pipeline_mode<synchronous>, transform_indices = @transform_3, window_bounds = array<i64: 8, 128>}, {pipeline_mode = #tpu.pipeline_mode<synchronous>, transform_indices = @transform_4, window_bounds = array<i64: 1, 128>}, {pipeline_mode = #tpu.pipeline_mode<synchronous>, transform_indices = @transform_5, window_bounds = array<i64: 128, 128>}, {pipeline_mode = #tpu.pipeline_mode<synchronous>, transform_indices = @transform_6, window_bounds = array<i64: 1, 128>}, {pipeline_mode = #tpu.pipeline_mode<synchronous>, transform_indices = @transform_7, window_bounds = array<i64: 128, 128>}, {pipeline_mode = #tpu.pipeline_mode<synchronous>, transform_indices = @transform_8, window_bounds = array<i64: 1, 128>}, {pipeline_mode = #tpu.pipeline_mode<synchronous>, transform_indices = @transform_9, window_bounds = array<i64: 1, 128>}, {pipeline_mode = #tpu.pipeline_mode<synchronous>, transform_indices = @transform_10, window_bounds = array<i64: 1, 1>}, {transform_indices = @transform_11, window_bounds = array<i64: 16, 1>}]} {
    %c0 = arith.constant 0 : index
    %c0_0 = arith.constant 0 : index
    %0 = vector.load %arg1[%c0, %c0_0] : memref<16x1024xbf16, #tpu.memory_space<vmem>>, vector<16x1024xbf16>
    %c0_1 = arith.constant 0 : index
    %c0_2 = arith.constant 0 : index
    %1 = vector.load %arg2[%c0_1, %c0_2] : memref<16x8xf32, #tpu.memory_space<vmem>>, vector<16x8xf32>
    %2 = arith.truncf %1 : vector<16x8xf32> to vector<16x8xbf16>
    %c0_3 = arith.constant 0 : index
    %c0_4 = arith.constant 0 : index
    %3 = vector.load %arg3[%c0_3, %c0_4] : memref<1024x128xbf16, #tpu.memory_space<vmem>>, vector<1024x128xbf16>
    %cst = arith.constant dense<0.000000e+00> : vector<16x128xf32>
    %4 = tpu.matmul %0, %3, %cst {dimension_numbers = #tpu.dot_dimension_numbers<[1], [0], [0], [1], [0, 0, 1, 1], [], []>} : vector<16x1024xbf16>, vector<1024x128xbf16>, vector<16x128xf32> -> vector<16x128xf32>
    %c0_5 = arith.constant 0 : index
    %c0_6 = arith.constant 0 : index
    %5 = vector.load %arg4[%c0_5, %c0_6] : memref<8x128xbf16, #tpu.memory_space<vmem>>, vector<8x128xbf16>
    %cst_7 = arith.constant dense<0.000000e+00> : vector<16x128xf32>
    %6 = tpu.matmul %2, %5, %cst_7 {dimension_numbers = #tpu.dot_dimension_numbers<[1], [0], [0], [1], [0, 0, 1, 1], [], []>} : vector<16x8xbf16>, vector<8x128xbf16>, vector<16x128xf32> -> vector<16x128xf32>
    %7 = arith.addf %4, %6 : vector<16x128xf32>
    %c0_8 = arith.constant 0 : index
    %c0_9 = arith.constant 0 : index
    %8 = vector.load %arg5[%c0_8, %c0_9] : memref<1x128xf32, #tpu.memory_space<vmem>>, vector<1x128xf32>
    %9 = vector.broadcast %8 : vector<1x128xf32> to vector<16x128xf32>
    %10 = arith.addf %7, %9 : vector<16x128xf32>
    %cst_10 = arith.constant 0.000000e+00 : f32
    %11 = vector.broadcast %cst_10 : f32 to vector<16x128xf32>
    %12 = arith.cmpf ogt, %10, %11 : vector<16x128xf32>
    %cst_11 = arith.constant 2.000000e-01 : f32
    %13 = vector.broadcast %cst_11 : f32 to vector<16x128xf32>
    %14 = arith.mulf %13, %10 : vector<16x128xf32>
    %15 = arith.select %12, %10, %14 : vector<16x128xi1>, vector<16x128xf32>
    %16 = arith.truncf %15 : vector<16x128xf32> to vector<16x128xbf16>
    %c0_12 = arith.constant 0 : index
    %c0_13 = arith.constant 0 : index
    %17 = vector.load %arg6[%c0_12, %c0_13] : memref<128x128xbf16, #tpu.memory_space<vmem>>, vector<128x128xbf16>
    %cst_14 = arith.constant dense<0.000000e+00> : vector<16x128xf32>
    %18 = tpu.matmul %16, %17, %cst_14 {dimension_numbers = #tpu.dot_dimension_numbers<[1], [0], [0], [1], [0, 0, 1, 1], [], []>} : vector<16x128xbf16>, vector<128x128xbf16>, vector<16x128xf32> -> vector<16x128xf32>
    %c0_15 = arith.constant 0 : index
    %c0_16 = arith.constant 0 : index
    %19 = vector.load %arg7[%c0_15, %c0_16] : memref<1x128xf32, #tpu.memory_space<vmem>>, vector<1x128xf32>
    %20 = vector.broadcast %19 : vector<1x128xf32> to vector<16x128xf32>
    %21 = arith.addf %18, %20 : vector<16x128xf32>
    %cst_17 = arith.constant 0.000000e+00 : f32
    %22 = vector.broadcast %cst_17 : f32 to vector<16x128xf32>
    %23 = arith.cmpf ogt, %21, %22 : vector<16x128xf32>
    %cst_18 = arith.constant 2.000000e-01 : f32
    %24 = vector.broadcast %cst_18 : f32 to vector<16x128xf32>
    %25 = arith.mulf %24, %21 : vector<16x128xf32>
    %26 = arith.select %23, %21, %25 : vector<16x128xi1>, vector<16x128xf32>
    %27 = arith.truncf %26 : vector<16x128xf32> to vector<16x128xbf16>
    %c0_19 = arith.constant 0 : index
    %c0_20 = arith.constant 0 : index
    %28 = vector.load %arg8[%c0_19, %c0_20] : memref<128x128xbf16, #tpu.memory_space<vmem>>, vector<128x128xbf16>
    %cst_21 = arith.constant dense<0.000000e+00> : vector<16x128xf32>
    %29 = tpu.matmul %27, %28, %cst_21 {dimension_numbers = #tpu.dot_dimension_numbers<[1], [0], [0], [1], [0, 0, 1, 1], [], []>} : vector<16x128xbf16>, vector<128x128xbf16>, vector<16x128xf32> -> vector<16x128xf32>
    %c0_22 = arith.constant 0 : index
    %c0_23 = arith.constant 0 : index
    %30 = vector.load %arg9[%c0_22, %c0_23] : memref<1x128xf32, #tpu.memory_space<vmem>>, vector<1x128xf32>
    %31 = vector.broadcast %30 : vector<1x128xf32> to vector<16x128xf32>
    %32 = arith.addf %29, %31 : vector<16x128xf32>
    %cst_24 = arith.constant 0.000000e+00 : f32
    %33 = vector.broadcast %cst_24 : f32 to vector<16x128xf32>
    %34 = arith.cmpf ogt, %32, %33 : vector<16x128xf32>
    %cst_25 = arith.constant 2.000000e-01 : f32
    %35 = vector.broadcast %cst_25 : f32 to vector<16x128xf32>
    %36 = arith.mulf %35, %32 : vector<16x128xf32>
    %37 = arith.select %34, %32, %36 : vector<16x128xi1>, vector<16x128xf32>
    %c0_26 = arith.constant 0 : index
    %c0_27 = arith.constant 0 : index
    %38 = vector.load %arg10[%c0_26, %c0_27] : memref<1x128xf32, #tpu.memory_space<vmem>>, vector<1x128xf32>
    %39 = vector.broadcast %38 : vector<1x128xf32> to vector<16x128xf32>
    %40 = arith.mulf %37, %39 : vector<16x128xf32>
    %cst_28 = arith.constant dense<0.000000e+00> : vector<16xf32>
    %41 = vector.multi_reduction <add>, %40, %cst_28 [1] : vector<16x128xf32> to vector<16xf32>
    %42 = vector.shape_cast %41 : vector<16xf32> to vector<16x1xf32>
    %c0_29 = arith.constant 0 : index
    %c0_30 = arith.constant 0 : index
    %43 = vector.load %arg11[%c0_29, %c0_30] : memref<1x1xf32, #tpu.memory_space<vmem>>, vector<1x1xf32>
    %44 = vector.broadcast %43 : vector<1x1xf32> to vector<16x1xf32>
    %45 = arith.addf %42, %44 : vector<16x1xf32>
    %cst_31 = arith.constant 0.000000e+00 : f32
    %46 = vector.broadcast %cst_31 : f32 to vector<16x1xf32>
    %47 = arith.subf %46, %45 : vector<16x1xf32>
    %48 = math.exp %47 : vector<16x1xf32>
    %cst_32 = arith.constant 1.000000e+00 : f32
    %49 = vector.broadcast %cst_32 : f32 to vector<16x1xf32>
    %50 = arith.addf %49, %48 : vector<16x1xf32>
    %51 = tpu.reciprocal %50 {approx = true} : vector<16x1xf32> -> vector<16x1xf32>
    %c0_33 = arith.constant 0 : index
    %c0_34 = arith.constant 0 : index
    %52 = vector.load %arg12[%c0_33, %c0_34] : memref<16x1xf32, #tpu.memory_space<vmem>>, vector<16x1xf32>
    tpu.vector_store %arg12[%c0_33, %c0_34], %51 {strides = array<i32>} : memref<16x1xf32, #tpu.memory_space<vmem>>, vector<16x1xf32>,
    return
  }
  func.func @transform_0(%arg0: i32) -> (i32, i32) {
    %c0_i32 = arith.constant 0 : i32
    %c0_i32_0 = arith.constant 0 : i32
    return %arg0, %c0_i32 : i32, i32
  }
  func.func @transform_1(%arg0: i32) -> (i32, i32) {
    %c0_i32 = arith.constant 0 : i32
    %c0_i32_0 = arith.constant 0 : i32
    return %arg0, %c0_i32 : i32, i32
  }
  func.func @transform_2(%arg0: i32) -> (i32, i32) {
    %c0_i32 = arith.constant 0 : i32
    %c0_i32_0 = arith.constant 0 : i32
    %c0_i32_1 = arith.constant 0 : i32
    return %c0_i32, %c0_i32_0 : i32, i32
  }
  func.func @transform_3(%arg0: i32) -> (i32, i32) {
    %c0_i32 = arith.constant 0 : i32
    %c0_i32_0 = arith.constant 0 : i32
    %c0_i32_1 = arith.constant 0 : i32
    return %c0_i32, %c0_i32_0 : i32, i32
  }
  func.func @transform_4(%arg0: i32) -> (i32, i32) {
    %c0_i32 = arith.constant 0 : i32
    %c0_i32_0 = arith.constant 0 : i32
    %c0_i32_1 = arith.constant 0 : i32
    return %c0_i32, %c0_i32_0 : i32, i32
  }
  func.func @transform_5(%arg0: i32) -> (i32, i32) {
    %c0_i32 = arith.constant 0 : i32
    %c0_i32_0 = arith.constant 0 : i32
    %c0_i32_1 = arith.constant 0 : i32
    return %c0_i32, %c0_i32_0 : i32, i32
  }
  func.func @transform_6(%arg0: i32) -> (i32, i32) {
    %c0_i32 = arith.constant 0 : i32
    %c0_i32_0 = arith.constant 0 : i32
    %c0_i32_1 = arith.constant 0 : i32
    return %c0_i32, %c0_i32_0 : i32, i32
  }
  func.func @transform_7(%arg0: i32) -> (i32, i32) {
    %c0_i32 = arith.constant 0 : i32
    %c0_i32_0 = arith.constant 0 : i32
    %c0_i32_1 = arith.constant 0 : i32
    return %c0_i32, %c0_i32_0 : i32, i32
  }
  func.func @transform_8(%arg0: i32) -> (i32, i32) {
    %c0_i32 = arith.constant 0 : i32
    %c0_i32_0 = arith.constant 0 : i32
    %c0_i32_1 = arith.constant 0 : i32
    return %c0_i32, %c0_i32_0 : i32, i32
  }
  func.func @transform_9(%arg0: i32) -> (i32, i32) {
    %c0_i32 = arith.constant 0 : i32
    %c0_i32_0 = arith.constant 0 : i32
    %c0_i32_1 = arith.constant 0 : i32
    return %c0_i32, %c0_i32_0 : i32, i32
  }
  func.func @transform_10(%arg0: i32) -> (i32, i32) {
    %c0_i32 = arith.constant 0 : i32
    %c0_i32_0 = arith.constant 0 : i32
    %c0_i32_1 = arith.constant 0 : i32
    return %c0_i32, %c0_i32_0 : i32, i32
  }
  func.func @transform_11(%arg0: i32) -> (i32, i32) {
    %c0_i32 = arith.constant 0 : i32
    %c0_i32_0 = arith.constant 0 : i32
    return %arg0, %c0_i32 : i32, i32
  }
}

</mosaic_0001>

<llo_original>
// kernel: tpu_custom_call.1
$region0: #{tpu_custom_call.1}
  #allocation0 [shape = 'u32[]', space=smem, size = 0x4, offset = 0x4, fixed_abs, tag = 'smem constant byte address 0x4 - core index']
  #allocation1 [shape = 'u32[144,128]{1,0:T(1,128)}', space=vmem, size = 0x12000, scoped, tag = 'internal scratch']
  #allocation2 [shape = 'f32[1,1]{1,0:T(1,128)S(1)}', space=vmem, size = 0x200, scoped, tag = 'scoped memory for tpu_custom_call.1']
  %s0 = inlined_call_operand.hbm [shape: bf16[16,1024], index: 0, kind: input, shape index: {}]
  %s1 = inlined_call_operand.vmem [shape: f32[16,8], index: 1, kind: input, shape index: {}]
  %s2 = inlined_call_operand.hbm [shape: bf16[1024,128], index: 2, kind: input, shape index: {}]
  %s3 = inlined_call_operand.vmem [shape: bf16[8,128], index: 3, kind: input, shape index: {}]
  %s4 = inlined_call_operand.vmem [shape: f32[1,128], index: 4, kind: input, shape index: {}]
  %s5 = inlined_call_operand.hbm [shape: bf16[128,128], index: 5, kind: input, shape index: {}]
  %s6 = inlined_call_operand.vmem [shape: f32[1,128], index: 6, kind: input, shape index: {}]
  %s7 = inlined_call_operand.hbm [shape: bf16[128,128], index: 7, kind: input, shape index: {}]
  %s8 = inlined_call_operand.vmem [shape: f32[1,128], index: 8, kind: input, shape index: {}]
  %s9 = inlined_call_operand.vmem [shape: f32[1,128], index: 9, kind: input, shape index: {}]
  %s10 = inlined_call_operand.<no memory space> [shape: f32[1,1], index: 10, kind: input, shape index: {}]
  %s11 = inlined_call_operand.vmem [shape: f32[16,1], index: 11, kind: output, shape index: {}]
  %s12 = sld [smem:[#allocation0]]
  $region70: #{tpu_custom_call.1} parent=0
    _
  %s14 = ssub.s32 1, %s12
  %s15 = scalar_select 0, %s14, %s12
  %v16 = vstv %s10
  %17 = vst [vmem:[#allocation2] sm:$0x1] %v16
  $region1: #{tpu_custom_call.1} parent=0
    #allocation3 [shape = 'u8[32768]{0}', space=vmem, size = 0x8000, scoped, tag = 'input window, operand 0, single buffered']
    #allocation4 [shape = 's32[1]{0}', space=sflag, size = 0x4, scoped, tag = 'scoped memory for tpu_custom_call.1']
    #allocation5 [shape = 'u8[262144]{0}', space=vmem, size = 0x40000, scoped, tag = 'input window, operand 2, single buffered']
    #allocation6 [shape = 's32[1]{0}', space=sflag, size = 0x4, scoped, tag = 'scoped memory for tpu_custom_call.1']
    #allocation7 [shape = 'u8[32768]{0}', space=vmem, size = 0x8000, scoped, tag = 'input window, operand 5, single buffered']
    #allocation8 [shape = 'u8[32768]{0}', space=vmem, size = 0x8000, scoped, tag = 'input window, operand 7, single buffered']
    #allocation9 [shape = 's32[1]{0}', space=sflag, size = 0x4, scoped, tag = 'scoped memory for tpu_custom_call.1']
    %18 = vsyncpa [#allocation4], 0
    %19 = vsyncpa [#allocation6], 0
    %20 = vsyncpa [#allocation9], 0
    // Predicated region
    $region2: #{tpu_custom_call.1} parent=1 // pred_check
      _
    $region3: #{tpu_custom_call.1} parent=1 // pred_check_branch
      %22 = sbr.rel (0) target = $region5
    $region4: #{tpu_custom_call.1} parent=1 // pred_region
      %s24 = ssub.s32 1024, 1024
      %25 = vsyncadd [#allocation4], %s24
      %s26 = sshll.u32 [#allocation3], 4
      %s27 = int_to_ptr.vmem [resolvable:$true] %s26
      %32 = dma.hbm_to_vmem [thread:$0]  %s0, 1024, %s27, [#allocation4], 512, 512, 32
    $region5: #{tpu_custom_call.1} parent=1 // pred_fallthru
      _
    // Predicated region
    $region6: #{tpu_custom_call.1} parent=1 // pred_check
      _
    $region7: #{tpu_custom_call.1} parent=1 // pred_check_branch
      %34 = sbr.rel (0) target = $region9
    $region8: #{tpu_custom_call.1} parent=1 // pred_region
      _
    $region9: #{tpu_custom_call.1} parent=1 // pred_fallthru
      _
    // Predicated region
    $region10: #{tpu_custom_call.1} parent=1 // pred_check
      _
    $region11: #{tpu_custom_call.1} parent=1 // pred_check_branch
      %36 = sbr.rel (0) target = $region13
    $region12: #{tpu_custom_call.1} parent=1 // pred_region
      %s38 = ssub.s32 8192, 8192
      %39 = vsyncadd [#allocation6], %s38
      %s40 = sshll.u32 [#allocation5], 4
      %s41 = int_to_ptr.vmem [resolvable:$true] %s40
      %46 = dma.hbm_to_vmem [thread:$0]  %s2, 8192, %s41, [#allocation6], 64, 64, 4
    $region13: #{tpu_custom_call.1} parent=1 // pred_fallthru
      _
    // Predicated region
    $region14: #{tpu_custom_call.1} parent=1 // pred_check
      _
    $region15: #{tpu_custom_call.1} parent=1 // pred_check_branch
      %48 = sbr.rel (0) target = $region17
    $region16: #{tpu_custom_call.1} parent=1 // pred_region
      _
    $region17: #{tpu_custom_call.1} parent=1 // pred_fallthru
      _
    // Predicated region
    $region18: #{tpu_custom_call.1} parent=1 // pred_check
      _
    $region19: #{tpu_custom_call.1} parent=1 // pred_check_branch
      %50 = sbr.rel (0) target = $region21
    $region20: #{tpu_custom_call.1} parent=1 // pred_region
      _
    $region21: #{tpu_custom_call.1} parent=1 // pred_fallthru
      _
    // Predicated region
    $region22: #{tpu_custom_call.1} parent=1 // pred_check
      _
    $region23: #{tpu_custom_call.1} parent=1 // pred_check_branch
      %52 = sbr.rel (0) target = $region25
    $region24: #{tpu_custom_call.1} parent=1 // pred_region
      %s54 = ssub.s32 1024, 1024
      %55 = vsyncadd [#allocation6], %s54
      %s56 = sshll.u32 [#allocation7], 4
      %s57 = int_to_ptr.vmem [resolvable:$true] %s56
      %62 = dma.hbm_to_vmem [thread:$0]  %s5, 1024, %s57, [#allocation6], 64, 64, 4
    $region25: #{tpu_custom_call.1} parent=1 // pred_fallthru
      _
    // Predicated region
    $region26: #{tpu_custom_call.1} parent=1 // pred_check
      _
    $region27: #{tpu_custom_call.1} parent=1 // pred_check_branch
      %64 = sbr.rel (0) target = $region29
    $region28: #{tpu_custom_call.1} parent=1 // pred_region
      _
    $region29: #{tpu_custom_call.1} parent=1 // pred_fallthru
      _
    // Predicated region
    $region30: #{tpu_custom_call.1} parent=1 // pred_check
      _
    $region31: #{tpu_custom_call.1} parent=1 // pred_check_branch
      %66 = sbr.rel (0) target = $region33
    $region32: #{tpu_custom_call.1} parent=1 // pred_region
      %s68 = ssub.s32 1024, 1024
      %69 = vsyncadd [#allocation9], %s68
      %s70 = sshll.u32 [#allocation8], 4
      %s71 = int_to_ptr.vmem [resolvable:$true] %s70
      %76 = dma.hbm_to_vmem [thread:$0]  %s7, 1024, %s71, [#allocation9], 64, 64, 4
    $region33: #{tpu_custom_call.1} parent=1 // pred_fallthru
      _
    // Predicated region
    $region34: #{tpu_custom_call.1} parent=1 // pred_check
      _
    $region35: #{tpu_custom_call.1} parent=1 // pred_check_branch
      %78 = sbr.rel (0) target = $region37
    $region36: #{tpu_custom_call.1} parent=1 // pred_region
      _
    $region37: #{tpu_custom_call.1} parent=1 // pred_fallthru
      _
    // Predicated region
    $region38: #{tpu_custom_call.1} parent=1 // pred_check
      _
    $region39: #{tpu_custom_call.1} parent=1 // pred_check_branch
      %80 = sbr.rel (0) target = $region41
    $region40: #{tpu_custom_call.1} parent=1 // pred_region
      _
    $region41: #{tpu_custom_call.1} parent=1 // pred_fallthru
      _
    // Predicated region
    $region42: #{tpu_custom_call.1} parent=1 // pred_check
      _
    $region43: #{tpu_custom_call.1} parent=1 // pred_check_branch
      %82 = sbr.rel (0) target = $region45
    $region44: #{tpu_custom_call.1} parent=1 // pred_region
      _
    $region45: #{tpu_custom_call.1} parent=1 // pred_fallthru
      _
    // Predicated region
    $region46: #{tpu_custom_call.1} parent=1 // pred_check
      _
    $region47: #{tpu_custom_call.1} parent=1 // pred_check_branch
      %84 = sbr.rel (0) target = $region49
    $region48: #{tpu_custom_call.1} parent=1 // pred_region
      %85 = dma.done [#allocation4], 1024
    $region49: #{tpu_custom_call.1} parent=1 // pred_fallthru
      _
    // Predicated region
    $region50: #{tpu_custom_call.1} parent=1 // pred_check
      _
    $region51: #{tpu_custom_call.1} parent=1 // pred_check_branch
      %87 = sbr.rel (0) target = $region53
    $region52: #{tpu_custom_call.1} parent=1 // pred_region
      %88 = dma.done [#allocation6], 8192
    $region53: #{tpu_custom_call.1} parent=1 // pred_fallthru
      _
    // Predicated region
    $region54: #{tpu_custom_call.1} parent=1 // pred_check
      _
    $region55: #{tpu_custom_call.1} parent=1 // pred_check_branch
      %90 = sbr.rel (0) target = $region57
    $region56: #{tpu_custom_call.1} parent=1 // pred_region
      %91 = dma.done [#allocation6], 1024
    $region57: #{tpu_custom_call.1} parent=1 // pred_fallthru
      _
    // Predicated region
    $region58: #{tpu_custom_call.1} parent=1 // pred_check
      _
    $region59: #{tpu_custom_call.1} parent=1 // pred_check_branch
      %93 = sbr.rel (0) target = $region61
    $region60: #{tpu_custom_call.1} parent=1 // pred_region
      %94 = dma.done [#allocation9], 1024
    $region61: #{tpu_custom_call.1} parent=1 // pred_fallthru
      _
    %v96 = vld [vmem:[#allocation3] sm:$0xff]
    %v97 = vld [vmem:[#allocation3 + $0x8] sm:$0xff]
    %v98 = vld [vmem:[#allocation3 + $0x10] sm:$0xff]
    %v99 = vld [vmem:[#allocation3 + $0x18] sm:$0xff]
    %v100 = vld [vmem:[#allocation3 + $0x20] sm:$0xff]
    %v101 = vld [vmem:[#allocation3 + $0x28] sm:$0xff]
    %v102 = vld [vmem:[#allocation3 + $0x30] sm:$0xff]
    %v103 = vld [vmem:[#allocation3 + $0x38] sm:$0xff]
    %v104 = vld [vmem:[%s1] sm:$0xff]
    %v105 = vld [vmem:[%s1 + $0x8] sm:$0xff]
    %v106 = vpack.c.bf16 %v105, %v104
    %v107 = vld [vmem:[#allocation5] sm:$0xf]
    %v108 = vld [vmem:[#allocation5 + $0x4] sm:$0xf]
    %v109 = vld [vmem:[#allocation5 + $0x8] sm:$0xf]
    %v110 = vld [vmem:[#allocation5 + $0xc] sm:$0xf]
    %v111 = vld [vmem:[#allocation5 + $0x10] sm:$0xf]
    %v112 = vld [vmem:[#allocation5 + $0x14] sm:$0xf]
    %v113 = vld [vmem:[#allocation5 + $0x18] sm:$0xf]
    %v114 = vld [vmem:[#allocation5 + $0x1c] sm:$0xf]
    %v115 = vld [vmem:[#allocation5 + $0x20] sm:$0xf]
    %v116 = vld [vmem:[#allocation5 + $0x24] sm:$0xf]
    %v117 = vld [vmem:[#allocation5 + $0x28] sm:$0xf]
    %v118 = vld [vmem:[#allocation5 + $0x2c] sm:$0xf]
    %v119 = vld [vmem:[#allocation5 + $0x30] sm:$0xf]
    %v120 = vld [vmem:[#allocation5 + $0x34] sm:$0xf]
    %v121 = vld [vmem:[#allocation5 + $0x38] sm:$0xf]
    %v122 = vld [vmem:[#allocation5 + $0x3c] sm:$0xf]
    %v123 = vld [vmem:[#allocation5 + $0x40] sm:$0xf]
    %v124 = vld [vmem:[#allocation5 + $0x44] sm:$0xf]
    %v125 = vld [vmem:[#allocation5 + $0x48] sm:$0xf]
    %v126 = vld [vmem:[#allocation5 + $0x4c] sm:$0xf]
    %v127 = vld [vmem:[#allocation5 + $0x50] sm:$0xf]
    %v128 = vld [vmem:[#allocation5 + $0x54] sm:$0xf]
    %v129 = vld [vmem:[#allocation5 + $0x58] sm:$0xf]
    %v130 = vld [vmem:[#allocation5 + $0x5c] sm:$0xf]
    %v131 = vld [vmem:[#allocation5 + $0x60] sm:$0xf]
    %v132 = vld [vmem:[#allocation5 + $0x64] sm:$0xf]
    %v133 = vld [vmem:[#allocation5 + $0x68] sm:$0xf]
    %v134 = vld [vmem:[#allocation5 + $0x6c] sm:$0xf]
    %v135 = vld [vmem:[#allocation5 + $0x70] sm:$0xf]
    %v136 = vld [vmem:[#allocation5 + $0x74] sm:$0xf]
    %v137 = vld [vmem:[#allocation5 + $0x78] sm:$0xf]
    %v138 = vld [vmem:[#allocation5 + $0x7c] sm:$0xf]
    %v139 = vld [vmem:[#allocation5 + $0x80] sm:$0xf]
    %v140 = vld [vmem:[#allocation5 + $0x84] sm:$0xf]
    %v141 = vld [vmem:[#allocation5 + $0x88] sm:$0xf]
    %v142 = vld [vmem:[#allocation5 + $0x8c] sm:$0xf]
    %v143 = vld [vmem:[#allocation5 + $0x90] sm:$0xf]
    %v144 = vld [vmem:[#allocation5 + $0x94] sm:$0xf]
    %v145 = vld [vmem:[#allocation5 + $0x98] sm:$0xf]
    %v146 = vld [vmem:[#allocation5 + $0x9c] sm:$0xf]
    %v147 = vld [vmem:[#allocation5 + $0xa0] sm:$0xf]
    %v148 = vld [vmem:[#allocation5 + $0xa4] sm:$0xf]
    %v149 = vld [vmem:[#allocation5 + $0xa8] sm:$0xf]
    %v150 = vld [vmem:[#allocation5 + $0xac] sm:$0xf]
    %v151 = vld [vmem:[#allocation5 + $0xb0] sm:$0xf]
    %v152 = vld [vmem:[#allocation5 + $0xb4] sm:$0xf]
    %v153 = vld [vmem:[#allocation5 + $0xb8] sm:$0xf]
    %v154 = vld [vmem:[#allocation5 + $0xbc] sm:$0xf]
    %v155 = vld [vmem:[#allocation5 + $0xc0] sm:$0xf]
    %v156 = vld [vmem:[#allocation5 + $0xc4] sm:$0xf]
    %v157 = vld [vmem:[#allocation5 + $0xc8] sm:$0xf]
    %v158 = vld [vmem:[#allocation5 + $0xcc] sm:$0xf]
    %v159 = vld [vmem:[#allocation5 + $0xd0] sm:$0xf]
    %v160 = vld [vmem:[#allocation5 + $0xd4] sm:$0xf]
    %v161 = vld [vmem:[#allocation5 + $0xd8] sm:$0xf]
    %v162 = vld [vmem:[#allocation5 + $0xdc] sm:$0xf]
    %v163 = vld [vmem:[#allocation5 + $0xe0] sm:$0xf]
    %v164 = vld [vmem:[#allocation5 + $0xe4] sm:$0xf]
    %v165 = vld [vmem:[#allocation5 + $0xe8] sm:$0xf]
    %v166 = vld [vmem:[#allocation5 + $0xec] sm:$0xf]
    %v167 = vld [vmem:[#allocation5 + $0xf0] sm:$0xf]
    %v168 = vld [vmem:[#allocation5 + $0xf4] sm:$0xf]
    %v169 = vld [vmem:[#allocation5 + $0xf8] sm:$0xf]
    %v170 = vld [vmem:[#allocation5 + $0xfc] sm:$0xf]
    %v171 = vld [vmem:[#allocation5 + $0x100] sm:$0xf]
    %v172 = vld [vmem:[#allocation5 + $0x104] sm:$0xf]
    %v173 = vld [vmem:[#allocation5 + $0x108] sm:$0xf]
    %v174 = vld [vmem:[#allocation5 + $0x10c] sm:$0xf]
    %v175 = vld [vmem:[#allocation5 + $0x110] sm:$0xf]
    %v176 = vld [vmem:[#allocation5 + $0x114] sm:$0xf]
    %v177 = vld [vmem:[#allocation5 + $0x118] sm:$0xf]
    %v178 = vld [vmem:[#allocation5 + $0x11c] sm:$0xf]
    %v179 = vld [vmem:[#allocation5 + $0x120] sm:$0xf]
    %v180 = vld [vmem:[#allocation5 + $0x124] sm:$0xf]
    %v181 = vld [vmem:[#allocation5 + $0x128] sm:$0xf]
    %v182 = vld [vmem:[#allocation5 + $0x12c] sm:$0xf]
    %v183 = vld [vmem:[#allocation5 + $0x130] sm:$0xf]
    %v184 = vld [vmem:[#allocation5 + $0x134] sm:$0xf]
    %v185 = vld [vmem:[#allocation5 + $0x138] sm:$0xf]
    %v186 = vld [vmem:[#allocation5 + $0x13c] sm:$0xf]
    %v187 = vld [vmem:[#allocation5 + $0x140] sm:$0xf]
    %v188 = vld [vmem:[#allocation5 + $0x144] sm:$0xf]
    %v189 = vld [vmem:[#allocation5 + $0x148] sm:$0xf]
    %v190 = vld [vmem:[#allocation5 + $0x14c] sm:$0xf]
    %v191 = vld [vmem:[#allocation5 + $0x150] sm:$0xf]
    %v192 = vld [vmem:[#allocation5 + $0x154] sm:$0xf]
    %v193 = vld [vmem:[#allocation5 + $0x158] sm:$0xf]
    %v194 = vld [vmem:[#allocation5 + $0x15c] sm:$0xf]
    %v195 = vld [vmem:[#allocation5 + $0x160] sm:$0xf]
    %v196 = vld [vmem:[#allocation5 + $0x164] sm:$0xf]
    %v197 = vld [vmem:[#allocation5 + $0x168] sm:$0xf]
    %v198 = vld [vmem:[#allocation5 + $0x16c] sm:$0xf]
    %v199 = vld [vmem:[#allocation5 + $0x170] sm:$0xf]
    %v200 = vld [vmem:[#allocation5 + $0x174] sm:$0xf]
    %v201 = vld [vmem:[#allocation5 + $0x178] sm:$0xf]
    %v202 = vld [vmem:[#allocation5 + $0x17c] sm:$0xf]
    %v203 = vld [vmem:[#allocation5 + $0x180] sm:$0xf]
    %v204 = vld [vmem:[#allocation5 + $0x184] sm:$0xf]
    %v205 = vld [vmem:[#allocation5 + $0x188] sm:$0xf]
    %v206 = vld [vmem:[#allocation5 + $0x18c] sm:$0xf]
    %v207 = vld [vmem:[#allocation5 + $0x190] sm:$0xf]
    %v208 = vld [vmem:[#allocation5 + $0x194] sm:$0xf]
    %v209 = vld [vmem:[#allocation5 + $0x198] sm:$0xf]
    %v210 = vld [vmem:[#allocation5 + $0x19c] sm:$0xf]
    %v211 = vld [vmem:[#allocation5 + $0x1a0] sm:$0xf]
    %v212 = vld [vmem:[#allocation5 + $0x1a4] sm:$0xf]
    %v213 = vld [vmem:[#allocation5 + $0x1a8] sm:$0xf]
    %v214 = vld [vmem:[#allocation5 + $0x1ac] sm:$0xf]
    %v215 = vld [vmem:[#allocation5 + $0x1b0] sm:$0xf]
    %v216 = vld [vmem:[#allocation5 + $0x1b4] sm:$0xf]
    %v217 = vld [vmem:[#allocation5 + $0x1b8] sm:$0xf]
    %v218 = vld [vmem:[#allocation5 + $0x1bc] sm:$0xf]
    %v219 = vld [vmem:[#allocation5 + $0x1c0] sm:$0xf]
    %v220 = vld [vmem:[#allocation5 + $0x1c4] sm:$0xf]
    %v221 = vld [vmem:[#allocation5 + $0x1c8] sm:$0xf]
    %v222 = vld [vmem:[#allocation5 + $0x1cc] sm:$0xf]
    %v223 = vld [vmem:[#allocation5 + $0x1d0] sm:$0xf]
    %v224 = vld [vmem:[#allocation5 + $0x1d4] sm:$0xf]
    %v225 = vld [vmem:[#allocation5 + $0x1d8] sm:$0xf]
    %v226 = vld [vmem:[#allocation5 + $0x1dc] sm:$0xf]
    %v227 = vld [vmem:[#allocation5 + $0x1e0] sm:$0xf]
    %v228 = vld [vmem:[#allocation5 + $0x1e4] sm:$0xf]
    %v229 = vld [vmem:[#allocation5 + $0x1e8] sm:$0xf]
    %v230 = vld [vmem:[#allocation5 + $0x1ec] sm:$0xf]
    %v231 = vld [vmem:[#allocation5 + $0x1f0] sm:$0xf]
    %v232 = vld [vmem:[#allocation5 + $0x1f4] sm:$0xf]
    %v233 = vld [vmem:[#allocation5 + $0x1f8] sm:$0xf]
    %v234 = vld [vmem:[#allocation5 + $0x1fc] sm:$0xf]
    %v235 = vld [vmem:[%s3] sm:$0xf]
    %vm236 = vcmask 64512
    %v238 = vsel %vm236, %v106, 0
    %vm240 = vcmask 1043456
    %v242 = vsel %vm240, %v235, 0
    %244 = vmatprep.subr.bf16.mxu0 0
    %245 = vmatpush1.bf16.msra.mxu0 %v242
    %246 = vmatprep.subr.bf16.mxu0 0
    %247 = vmatpush1.bf16.msra.mxu0 0
    %248 = vmatprep.subr.bf16.mxu0 0
    %249 = vmatpush1.bf16.msra.mxu0 0
    %250 = vmatprep.subr.bf16.mxu0 0
    %251 = vmatpush1.bf16.msra.mxu0 0
    %252 = vmatprep.subr.bf16.mxu0 0
    %253 = vmatpush1.bf16.msra.mxu0 0
    %254 = vmatprep.subr.bf16.mxu0 0
    %255 = vmatpush1.bf16.msra.mxu0 0
    %256 = vmatprep.subr.bf16.mxu0 0
    %257 = vmatpush1.bf16.msra.mxu0 0
    %258 = vmatprep.subr.bf16.mxu0 0
    %259 = vmatpush1.bf16.msra.mxu0 0
    %260 = vmatprep.subr.bf16.mxu0 0
    %261 = vmatpush1.bf16.msra.mxu0 0
    %262 = vmatprep.subr.bf16.mxu0 0
    %263 = vmatpush1.bf16.msra.mxu0 0
    %264 = vmatprep.subr.bf16.mxu0 0
    %265 = vmatpush1.bf16.msra.mxu0 0
    %266 = vmatprep.subr.bf16.mxu0 0
    %267 = vmatpush1.bf16.msra.mxu0 0
    %268 = vmatprep.subr.bf16.mxu0 0
    %269 = vmatpush1.bf16.msra.mxu0 0
    %270 = vmatprep.subr.bf16.mxu0 0
    %271 = vmatpush1.bf16.msra.mxu0 0
    %272 = vmatprep.subr.bf16.mxu0 0
    %273 = vmatpush1.bf16.msra.mxu0 0
    %274 = vmatprep.subr.bf16.mxu0 0
    %275 = vmatpush1.bf16.msra.mxu0 0
    %276 = vmatprep.mubr.bf16.mxu0 0
    %277 = vmatmul.mubr.bf16.gmra.mrb[0].mxu0 %v238
    %v278 = vpop.f32.mrb[0].mxu0
    %v279 = vadd.f32 0.0, %v278
    %v280 = vpop.f32.mrb[0].mxu0
    %v281 = vpop.f32.mrb[0].mxu0
    %v282 = vadd.f32 0.0, %v281
    %v283 = vpop.f32.mrb[0].mxu0
    %284 = vdwg.mxu0
    %v293 = vunpack.c.l.b16 %v96
    %v294 = vunpack.c.h.b16 %v96
    %v295 = vunpack.c.l.b16 %v97
    %v296 = vunpack.c.h.b16 %v97
    %v297 = vunpack.c.l.b16 %v98
    %v298 = vunpack.c.h.b16 %v98
    %v299 = vunpack.c.l.b16 %v99
    %v300 = vunpack.c.h.b16 %v99
    %v301 = vunpack.c.l.b16 %v100
    %v302 = vunpack.c.h.b16 %v100
    %v303 = vunpack.c.l.b16 %v101
    %v304 = vunpack.c.h.b16 %v101
    %v305 = vunpack.c.l.b16 %v102
    %v306 = vunpack.c.h.b16 %v102
    %v307 = vunpack.c.l.b16 %v103
    %v308 = vunpack.c.h.b16 %v103
    %v309 = vpack.c.b16 %v301, %v293
    %v310 = vpack.c.b16 %v302, %v294
    %v311 = vpack.c.b16 %v303, %v295
    %v312 = vpack.c.b16 %v304, %v296
    %v313 = vpack.c.b16 %v305, %v297
    %v314 = vpack.c.b16 %v306, %v298
    %v315 = vpack.c.b16 %v307, %v299
    %v316 = vpack.c.b16 %v308, %v300
    %v453 = vunpack.c.l.b16 %v107
    %v454 = vunpack.c.l.b16 %v108
    %v455 = vunpack.c.l.b16 %v109
    %v456 = vunpack.c.l.b16 %v110
    %v457 = vunpack.c.l.b16 %v111
    %v458 = vunpack.c.l.b16 %v112
    %v459 = vunpack.c.l.b16 %v113
    %v460 = vunpack.c.l.b16 %v114
    %v461 = vunpack.c.l.b16 %v115
    %v462 = vunpack.c.l.b16 %v116
    %v463 = vunpack.c.l.b16 %v117
    %v464 = vunpack.c.l.b16 %v118
    %v465 = vunpack.c.l.b16 %v119
    %v466 = vunpack.c.l.b16 %v120
    %v467 = vunpack.c.l.b16 %v121
    %v468 = vunpack.c.l.b16 %v122
    %v469 = vunpack.c.l.b16 %v123
    %v470 = vunpack.c.l.b16 %v124
    %v471 = vunpack.c.l.b16 %v125
    %v472 = vunpack.c.l.b16 %v126
    %v473 = vunpack.c.l.b16 %v127
    %v474 = vunpack.c.l.b16 %v128
    %v475 = vunpack.c.l.b16 %v129
    %v476 = vunpack.c.l.b16 %v130
    %v477 = vunpack.c.l.b16 %v131
    %v478 = vunpack.c.l.b16 %v132
    %v479 = vunpack.c.l.b16 %v133
    %v480 = vunpack.c.l.b16 %v134
    %v481 = vunpack.c.l.b16 %v135
    %v482 = vunpack.c.l.b16 %v136
    %v483 = vunpack.c.l.b16 %v137
    %v484 = vunpack.c.l.b16 %v138
    %v485 = vunpack.c.l.b16 %v139
    %v486 = vunpack.c.l.b16 %v140
    %v487 = vunpack.c.l.b16 %v141
    %v488 = vunpack.c.l.b16 %v142
    %v489 = vunpack.c.l.b16 %v143
    %v490 = vunpack.c.l.b16 %v144
    %v491 = vunpack.c.l.b16 %v145
    %v492 = vunpack.c.l.b16 %v146
    %v493 = vunpack.c.l.b16 %v147
    %v494 = vunpack.c.l.b16 %v148
    %v495 = vunpack.c.l.b16 %v149
    %v496 = vunpack.c.l.b16 %v150
    %v497 = vunpack.c.l.b16 %v151
    %v498 = vunpack.c.l.b16 %v152
    %v499 = vunpack.c.l.b16 %v153
    %v500 = vunpack.c.l.b16 %v154
    %v501 = vunpack.c.l.b16 %v155
    %v502 = vunpack.c.l.b16 %v156
    %v503 = vunpack.c.l.b16 %v157
    %v504 = vunpack.c.l.b16 %v158
    %v505 = vunpack.c.l.b16 %v159
    %v506 = vunpack.c.l.b16 %v160
    %v507 = vunpack.c.l.b16 %v161
    %v508 = vunpack.c.l.b16 %v162
    %v509 = vunpack.c.l.b16 %v163
    %v510 = vunpack.c.l.b16 %v164
    %v511 = vunpack.c.l.b16 %v165
    %v512 = vunpack.c.l.b16 %v166
    %v513 = vunpack.c.l.b16 %v167
    %v514 = vunpack.c.l.b16 %v168
    %v515 = vunpack.c.l.b16 %v169
    %v516 = vunpack.c.l.b16 %v170
    %v517 = vunpack.c.l.b16 %v171
    %v518 = vunpack.c.l.b16 %v172
    %v519 = vunpack.c.l.b16 %v173
    %v520 = vunpack.c.l.b16 %v174
    %v521 = vunpack.c.l.b16 %v175
    %v522 = vunpack.c.l.b16 %v176
    %v523 = vunpack.c.l.b16 %v177
    %v524 = vunpack.c.l.b16 %v178
    %v525 = vunpack.c.l.b16 %v179
    %v526 = vunpack.c.l.b16 %v180
    %v527 = vunpack.c.l.b16 %v181
    %v528 = vunpack.c.l.b16 %v182
    %v529 = vunpack.c.l.b16 %v183
    %v530 = vunpack.c.l.b16 %v184
    %v531 = vunpack.c.l.b16 %v185
    %v532 = vunpack.c.l.b16 %v186
    %v533 = vunpack.c.l.b16 %v187
    %v534 = vunpack.c.l.b16 %v188
    %v535 = vunpack.c.l.b16 %v189
    %v536 = vunpack.c.l.b16 %v190
    %v537 = vunpack.c.l.b16 %v191
    %v538 = vunpack.c.l.b16 %v192
    %v539 = vunpack.c.l.b16 %v193
    %v540 = vunpack.c.l.b16 %v194
    %v541 = vunpack.c.l.b16 %v195
    %v542 = vunpack.c.l.b16 %v196
    %v543 = vunpack.c.l.b16 %v197
    %v544 = vunpack.c.l.b16 %v198
    %v545 = vunpack.c.l.b16 %v199
    %v546 = vunpack.c.l.b16 %v200
    %v547 = vunpack.c.l.b16 %v201
    %v548 = vunpack.c.l.b16 %v202
    %v549 = vunpack.c.l.b16 %v203
    %v550 = vunpack.c.l.b16 %v204
    %v551 = vunpack.c.l.b16 %v205
    %v552 = vunpack.c.l.b16 %v206
    %v553 = vunpack.c.l.b16 %v207
    %v554 = vunpack.c.l.b16 %v208
    %v555 = vunpack.c.l.b16 %v209
    %v556 = vunpack.c.l.b16 %v210
    %v557 = vunpack.c.l.b16 %v211
    %v558 = vunpack.c.l.b16 %v212
    %v559 = vunpack.c.l.b16 %v213
    %v560 = vunpack.c.l.b16 %v214
    %v561 = vunpack.c.l.b16 %v215
    %v562 = vunpack.c.l.b16 %v216
    %v563 = vunpack.c.l.b16 %v217
    %v564 = vunpack.c.l.b16 %v218
    %v565 = vunpack.c.l.b16 %v219
    %v566 = vunpack.c.l.b16 %v220
    %v567 = vunpack.c.l.b16 %v221
    %v568 = vunpack.c.l.b16 %v222
    %v569 = vunpack.c.l.b16 %v223
    %v570 = vunpack.c.l.b16 %v224
    %v571 = vunpack.c.l.b16 %v225
    %v572 = vunpack.c.l.b16 %v226
    %v573 = vunpack.c.l.b16 %v227
    %v574 = vunpack.c.l.b16 %v228
    %v575 = vunpack.c.l.b16 %v229
    %v576 = vunpack.c.l.b16 %v230
    %v577 = vunpack.c.l.b16 %v231
    %v578 = vunpack.c.l.b16 %v232
    %v579 = vunpack.c.l.b16 %v233
    %v580 = vunpack.c.l.b16 %v234
    %v581 = vpack.c.b16 %v454, %v453
    %v582 = vpack.c.b16 %v456, %v455
    %v583 = vpack.c.b16 %v458, %v457
    %v584 = vpack.c.b16 %v460, %v459
    %v585 = vpack.c.b16 %v462, %v461
    %v586 = vpack.c.b16 %v464, %v463
    %v587 = vpack.c.b16 %v466, %v465
    %v588 = vpack.c.b16 %v468, %v467
    %v589 = vpack.c.b16 %v470, %v469
    %v590 = vpack.c.b16 %v472, %v471
    %v591 = vpack.c.b16 %v474, %v473
    %v592 = vpack.c.b16 %v476, %v475
    %v593 = vpack.c.b16 %v478, %v477
    %v594 = vpack.c.b16 %v480, %v479
    %v595 = vpack.c.b16 %v482, %v481
    %v596 = vpack.c.b16 %v484, %v483
    %v597 = vpack.c.b16 %v486, %v485
    %v598 = vpack.c.b16 %v488, %v487
    %v599 = vpack.c.b16 %v490, %v489
    %v600 = vpack.c.b16 %v492, %v491
    %v601 = vpack.c.b16 %v494, %v493
    %v602 = vpack.c.b16 %v496, %v495
    %v603 = vpack.c.b16 %v498, %v497
    %v604 = vpack.c.b16 %v500, %v499
    %v605 = vpack.c.b16 %v502, %v501
    %v606 = vpack.c.b16 %v504, %v503
    %v607 = vpack.c.b16 %v506, %v505
    %v608 = vpack.c.b16 %v508, %v507
    %v609 = vpack.c.b16 %v510, %v509
    %v610 = vpack.c.b16 %v512, %v511
    %v611 = vpack.c.b16 %v514, %v513
    %v612 = vpack.c.b16 %v516, %v515
    %v613 = vpack.c.b16 %v518, %v517
    %v614 = vpack.c.b16 %v520, %v519
    %v615 = vpack.c.b16 %v522, %v521
    %v616 = vpack.c.b16 %v524, %v523
    %v617 = vpack.c.b16 %v526, %v525
    %v618 = vpack.c.b16 %v528, %v527
    %v619 = vpack.c.b16 %v530, %v529
    %v620 = vpack.c.b16 %v532, %v531
    %v621 = vpack.c.b16 %v534, %v533
    %v622 = vpack.c.b16 %v536, %v535
    %v623 = vpack.c.b16 %v538, %v537
    %v624 = vpack.c.b16 %v540, %v539
    %v625 = vpack.c.b16 %v542, %v541
    %v626 = vpack.c.b16 %v544, %v543
    %v627 = vpack.c.b16 %v546, %v545
    %v628 = vpack.c.b16 %v548, %v547
    %v629 = vpack.c.b16 %v550, %v549
    %v630 = vpack.c.b16 %v552, %v551
    %v631 = vpack.c.b16 %v554, %v553
    %v632 = vpack.c.b16 %v556, %v555
    %v633 = vpack.c.b16 %v558, %v557
    %v634 = vpack.c.b16 %v560, %v559
    %v635 = vpack.c.b16 %v562, %v561
    %v636 = vpack.c.b16 %v564, %v563
    %v637 = vpack.c.b16 %v566, %v565
    %v638 = vpack.c.b16 %v568, %v567
    %v639 = vpack.c.b16 %v570, %v569
    %v640 = vpack.c.b16 %v572, %v571
    %v641 = vpack.c.b16 %v574, %v573
    %v642 = vpack.c.b16 %v576, %v575
    %v643 = vpack.c.b16 %v578, %v577
    %v644 = vpack.c.b16 %v580, %v579
    %709 = vmatprep.subr.bf16.mxu0 0
    %710 = vmatpush1.bf16.msra.mxu0 %v581
    %711 = vmatprep.subr.bf16.mxu0 0
    %712 = vmatpush1.bf16.msra.mxu0 %v582
    %713 = vmatprep.subr.bf16.mxu0 0
    %714 = vmatpush1.bf16.msra.mxu0 %v583
    %715 = vmatprep.subr.bf16.mxu0 0
    %716 = vmatpush1.bf16.msra.mxu0 %v584
    %717 = vmatprep.subr.bf16.mxu0 0
    %718 = vmatpush1.bf16.msra.mxu0 %v585
    %719 = vmatprep.subr.bf16.mxu0 0
    %720 = vmatpush1.bf16.msra.mxu0 %v586
    %721 = vmatprep.subr.bf16.mxu0 0
    %722 = vmatpush1.bf16.msra.mxu0 %v587
    %723 = vmatprep.subr.bf16.mxu0 0
    %724 = vmatpush1.bf16.msra.mxu0 %v588
    %725 = vmatprep.subr.bf16.mxu0 0
    %726 = vmatpush1.bf16.msra.mxu0 %v589
    %727 = vmatprep.subr.bf16.mxu0 0
    %728 = vmatpush1.bf16.msra.mxu0 %v590
    %729 = vmatprep.subr.bf16.mxu0 0
    %730 = vmatpush1.bf16.msra.mxu0 %v591
    %731 = vmatprep.subr.bf16.mxu0 0
    %732 = vmatpush1.bf16.msra.mxu0 %v592
    %733 = vmatprep.subr.bf16.mxu0 0
    %734 = vmatpush1.bf16.msra.mxu0 %v593
    %735 = vmatprep.subr.bf16.mxu0 0
    %736 = vmatpush1.bf16.msra.mxu0 %v594
    %737 = vmatprep.subr.bf16.mxu0 0
    %738 = vmatpush1.bf16.msra.mxu0 %v595
    %739 = vmatprep.subr.bf16.mxu0 0
    %740 = vmatpush1.bf16.msra.mxu0 %v596
    %741 = vmatprep.mubr.bf16.mxu0 %v310
    %742 = vmatmul.mubr.bf16.gmra.mrb[0].mxu0 %v309
    %v743 = vpop.f32.mrb[0].mxu0
    %v744 = vadd.f32 %v279, %v743
    %v745 = vpop.f32.mrb[0].mxu0
    %v746 = vpop.f32.mrb[0].mxu0
    %v747 = vadd.f32 %v282, %v746
    %v748 = vpop.f32.mrb[0].mxu0
    %749 = vdwg.mxu0
    %750 = vmatprep.subr.bf16.mxu0 0
    %751 = vmatpush1.bf16.msra.mxu0 %v597
    %752 = vmatprep.subr.bf16.mxu0 0
    %753 = vmatpush1.bf16.msra.mxu0 %v598
    %754 = vmatprep.subr.bf16.mxu0 0
    %755 = vmatpush1.bf16.msra.mxu0 %v599
    %756 = vmatprep.subr.bf16.mxu0 0
    %757 = vmatpush1.bf16.msra.mxu0 %v600
    %758 = vmatprep.subr.bf16.mxu0 0
    %759 = vmatpush1.bf16.msra.mxu0 %v601
    %760 = vmatprep.subr.bf16.mxu0 0
    %761 = vmatpush1.bf16.msra.mxu0 %v602
    %762 = vmatprep.subr.bf16.mxu0 0
    %763 = vmatpush1.bf16.msra.mxu0 %v603
    %764 = vmatprep.subr.bf16.mxu0 0
    %765 = vmatpush1.bf16.msra.mxu0 %v604
    %766 = vmatprep.subr.bf16.mxu0 0
    %767 = vmatpush1.bf16.msra.mxu0 %v605
    %768 = vmatprep.subr.bf16.mxu0 0
    %769 = vmatpush1.bf16.msra.mxu0 %v606
    %770 = vmatprep.subr.bf16.mxu0 0
    %771 = vmatpush1.bf16.msra.mxu0 %v607
    %772 = vmatprep.subr.bf16.mxu0 0
    %773 = vmatpush1.bf16.msra.mxu0 %v608
    %774 = vmatprep.subr.bf16.mxu0 0
    %775 = vmatpush1.bf16.msra.mxu0 %v609
    %776 = vmatprep.subr.bf16.mxu0 0
    %777 = vmatpush1.bf16.msra.mxu0 %v610
    %778 = vmatprep.subr.bf16.mxu0 0
    %779 = vmatpush1.bf16.msra.mxu0 %v611
    %780 = vmatprep.subr.bf16.mxu0 0
    %781 = vmatpush1.bf16.msra.mxu0 %v612
    %782 = vmatprep.mubr.bf16.mxu0 %v312
    %783 = vmatmul.mubr.bf16.gmra.mrb[0].mxu0 %v311
    %v784 = vpop.f32.mrb[0].mxu0
    %v785 = vadd.f32 %v744, %v784
    %v786 = vpop.f32.mrb[0].mxu0
    %v787 = vpop.f32.mrb[0].mxu0
    %v788 = vadd.f32 %v747, %v787
    %v789 = vpop.f32.mrb[0].mxu0
    %790 = vdwg.mxu0
    %791 = vmatprep.subr.bf16.mxu0 0
    %792 = vmatpush1.bf16.msra.mxu0 %v613
    %793 = vmatprep.subr.bf16.mxu0 0
    %794 = vmatpush1.bf16.msra.mxu0 %v614
    %795 = vmatprep.subr.bf16.mxu0 0
    %796 = vmatpush1.bf16.msra.mxu0 %v615
    %797 = vmatprep.subr.bf16.mxu0 0
    %798 = vmatpush1.bf16.msra.mxu0 %v616
    %799 = vmatprep.subr.bf16.mxu0 0
    %800 = vmatpush1.bf16.msra.mxu0 %v617
    %801 = vmatprep.subr.bf16.mxu0 0
    %802 = vmatpush1.bf16.msra.mxu0 %v618
    %803 = vmatprep.subr.bf16.mxu0 0
    %804 = vmatpush1.bf16.msra.mxu0 %v619
    %805 = vmatprep.subr.bf16.mxu0 0
    %806 = vmatpush1.bf16.msra.mxu0 %v620
    %807 = vmatprep.subr.bf16.mxu0 0
    %808 = vmatpush1.bf16.msra.mxu0 %v621
    %809 = vmatprep.subr.bf16.mxu0 0
    %810 = vmatpush1.bf16.msra.mxu0 %v622
    %811 = vmatprep.subr.bf16.mxu0 0
    %812 = vmatpush1.bf16.msra.mxu0 %v623
    %813 = vmatprep.subr.bf16.mxu0 0
    %814 = vmatpush1.bf16.msra.mxu0 %v624
    %815 = vmatprep.subr.bf16.mxu0 0
    %816 = vmatpush1.bf16.msra.mxu0 %v625
    %817 = vmatprep.subr.bf16.mxu0 0
    %818 = vmatpush1.bf16.msra.mxu0 %v626
    %819 = vmatprep.subr.bf16.mxu0 0
    %820 = vmatpush1.bf16.msra.mxu0 %v627
    %821 = vmatprep.subr.bf16.mxu0 0
    %822 = vmatpush1.bf16.msra.mxu0 %v628
    %823 = vmatprep.mubr.bf16.mxu0 %v314
    %824 = vmatmul.mubr.bf16.gmra.mrb[0].mxu0 %v313
    %v825 = vpop.f32.mrb[0].mxu0
    %v826 = vadd.f32 %v785, %v825
    %v827 = vpop.f32.mrb[0].mxu0
    %v828 = vpop.f32.mrb[0].mxu0
    %v829 = vadd.f32 %v788, %v828
    %v830 = vpop.f32.mrb[0].mxu0
    %831 = vdwg.mxu0
    %832 = vmatprep.subr.bf16.mxu0 0
    %833 = vmatpush1.bf16.msra.mxu0 %v629
    %834 = vmatprep.subr.bf16.mxu0 0
    %835 = vmatpush1.bf16.msra.mxu0 %v630
    %836 = vmatprep.subr.bf16.mxu0 0
    %837 = vmatpush1.bf16.msra.mxu0 %v631
    %838 = vmatprep.subr.bf16.mxu0 0
    %839 = vmatpush1.bf16.msra.mxu0 %v632
    %840 = vmatprep.subr.bf16.mxu0 0
    %841 = vmatpush1.bf16.msra.mxu0 %v633
    %842 = vmatprep.subr.bf16.mxu0 0
    %843 = vmatpush1.bf16.msra.mxu0 %v634
    %844 = vmatprep.subr.bf16.mxu0 0
    %845 = vmatpush1.bf16.msra.mxu0 %v635
    %846 = vmatprep.subr.bf16.mxu0 0
    %847 = vmatpush1.bf16.msra.mxu0 %v636
    %848 = vmatprep.subr.bf16.mxu0 0
    %849 = vmatpush1.bf16.msra.mxu0 %v637
    %850 = vmatprep.subr.bf16.mxu0 0
    %851 = vmatpush1.bf16.msra.mxu0 %v638
    %852 = vmatprep.subr.bf16.mxu0 0
    %853 = vmatpush1.bf16.msra.mxu0 %v639
    %854 = vmatprep.subr.bf16.mxu0 0
    %855 = vmatpush1.bf16.msra.mxu0 %v640
    %856 = vmatprep.subr.bf16.mxu0 0
    %857 = vmatpush1.bf16.msra.mxu0 %v641
    %858 = vmatprep.subr.bf16.mxu0 0
    %859 = vmatpush1.bf16.msra.mxu0 %v642
    %860 = vmatprep.subr.bf16.mxu0 0
    %861 = vmatpush1.bf16.msra.mxu0 %v643
    %862 = vmatprep.subr.bf16.mxu0 0
    %863 = vmatpush1.bf16.msra.mxu0 %v644
    %864 = vmatprep.mubr.bf16.mxu0 %v316
    %865 = vmatmul.mubr.bf16.gmra.mrb[0].mxu0 %v315
    %v866 = vpop.f32.mrb[0].mxu0
    %v867 = vadd.f32 %v826, %v866
    %v868 = vpop.f32.mrb[0].mxu0
    %v869 = vpop.f32.mrb[0].mxu0
    %v870 = vadd.f32 %v829, %v869
    %v871 = vpop.f32.mrb[0].mxu0
    %872 = vdwg.mxu0
    %v873 = vld [vmem:[%s4] sm:$0x1]
    %v875 = vlaneseq
    %v876 = vshrl.u32 %v875, 7
    %v877 = vsub.s32 0, %v876
    %v878 = vrot.slane %v873, %v877
    %v880 = vadd.f32 %v867, %v878
    %v881 = vadd.f32 %v870, %v878
    %vm882 = vcmp.gt.f32.partialorder %v880, 0.0
    %vm883 = vcmp.gt.f32.partialorder %v881, 0.0
    %v884 = vmul.f32 %v880, 0.2
    %v885 = vmul.f32 %v881, 0.2
    %v886 = vsel %vm882, %v880, %v884
    %v887 = vsel %vm883, %v881, %v885
    %v888 = vpack.c.bf16 %v887, %v886
    %v889 = vld [vmem:[#allocation7] sm:$0xf]
    %v890 = vld [vmem:[#allocation7 + $0x4] sm:$0xf]
    %v891 = vld [vmem:[#allocation7 + $0x8] sm:$0xf]
    %v892 = vld [vmem:[#allocation7 + $0xc] sm:$0xf]
    %v893 = vld [vmem:[#allocation7 + $0x10] sm:$0xf]
    %v894 = vld [vmem:[#allocation7 + $0x14] sm:$0xf]
    %v895 = vld [vmem:[#allocation7 + $0x18] sm:$0xf]
    %v896 = vld [vmem:[#allocation7 + $0x1c] sm:$0xf]
    %v897 = vld [vmem:[#allocation7 + $0x20] sm:$0xf]
    %v898 = vld [vmem:[#allocation7 + $0x24] sm:$0xf]
    %v899 = vld [vmem:[#allocation7 + $0x28] sm:$0xf]
    %v900 = vld [vmem:[#allocation7 + $0x2c] sm:$0xf]
    %v901 = vld [vmem:[#allocation7 + $0x30] sm:$0xf]
    %v902 = vld [vmem:[#allocation7 + $0x34] sm:$0xf]
    %v903 = vld [vmem:[#allocation7 + $0x38] sm:$0xf]
    %v904 = vld [vmem:[#allocation7 + $0x3c] sm:$0xf]
    %v905 = vld [vmem:[%s6] sm:$0x1]
    %v907 = vlaneseq
    %v908 = vshrl.u32 %v907, 7
    %v909 = vsub.s32 0, %v908
    %v910 = vrot.slane %v905, %v909
    %v928 = vunpack.c.l.b16 %v889
    %v929 = vunpack.c.l.b16 %v890
    %v930 = vunpack.c.l.b16 %v891
    %v931 = vunpack.c.l.b16 %v892
    %v932 = vunpack.c.l.b16 %v893
    %v933 = vunpack.c.l.b16 %v894
    %v934 = vunpack.c.l.b16 %v895
    %v935 = vunpack.c.l.b16 %v896
    %v936 = vunpack.c.l.b16 %v897
    %v937 = vunpack.c.l.b16 %v898
    %v938 = vunpack.c.l.b16 %v899
    %v939 = vunpack.c.l.b16 %v900
    %v940 = vunpack.c.l.b16 %v901
    %v941 = vunpack.c.l.b16 %v902
    %v942 = vunpack.c.l.b16 %v903
    %v943 = vunpack.c.l.b16 %v904
    %v944 = vpack.c.b16 %v929, %v928
    %v945 = vpack.c.b16 %v931, %v930
    %v946 = vpack.c.b16 %v933, %v932
    %v947 = vpack.c.b16 %v935, %v934
    %v948 = vpack.c.b16 %v937, %v936
    %v949 = vpack.c.b16 %v939, %v938
    %v950 = vpack.c.b16 %v941, %v940
    %v951 = vpack.c.b16 %v943, %v942
    %960 = vmatprep.subr.bf16.mxu0 0
    %961 = vmatpush1.bf16.msra.mxu0 %v944
    %962 = vmatprep.subr.bf16.mxu0 0
    %963 = vmatpush1.bf16.msra.mxu0 %v945
    %964 = vmatprep.subr.bf16.mxu0 0
    %965 = vmatpush1.bf16.msra.mxu0 %v946
    %966 = vmatprep.subr.bf16.mxu0 0
    %967 = vmatpush1.bf16.msra.mxu0 %v947
    %968 = vmatprep.subr.bf16.mxu0 0
    %969 = vmatpush1.bf16.msra.mxu0 %v948
    %970 = vmatprep.subr.bf16.mxu0 0
    %971 = vmatpush1.bf16.msra.mxu0 %v949
    %972 = vmatprep.subr.bf16.mxu0 0
    %973 = vmatpush1.bf16.msra.mxu0 %v950
    %974 = vmatprep.subr.bf16.mxu0 0
    %975 = vmatpush1.bf16.msra.mxu0 %v951
    %976 = vmatprep.subr.bf16.mxu0 0
    %977 = vmatpush1.bf16.msra.mxu0 0
    %978 = vmatprep.subr.bf16.mxu0 0
    %979 = vmatpush1.bf16.msra.mxu0 0
    %980 = vmatprep.subr.bf16.mxu0 0
    %981 = vmatpush1.bf16.msra.mxu0 0
    %982 = vmatprep.subr.bf16.mxu0 0
    %983 = vmatpush1.bf16.msra.mxu0 0
    %984 = vmatprep.subr.bf16.mxu0 0
    %985 = vmatpush1.bf16.msra.mxu0 0
    %986 = vmatprep.subr.bf16.mxu0 0
    %987 = vmatpush1.bf16.msra.mxu0 0
    %988 = vmatprep.subr.bf16.mxu0 0
    %989 = vmatpush1.bf16.msra.mxu0 0
    %990 = vmatprep.subr.bf16.mxu0 0
    %991 = vmatpush1.bf16.msra.mxu0 0
    %992 = vmatprep.mubr.bf16.mxu0 0
    %993 = vmatmul.mubr.bf16.gmra.mrb[0].mxu0 %v888
    %v994 = vpop.f32.mrb[0].mxu0
    %v995 = vadd.f32 %v910, %v994
    %v996 = vpop.f32.mrb[0].mxu0
    %v997 = vpop.f32.mrb[0].mxu0
    %v998 = vadd.f32 %v910, %v997
    %v999 = vpop.f32.mrb[0].mxu0
    %1000 = vdwg.mxu0
    %vm1001 = vcmp.gt.f32.partialorder %v995, 0.0
    %vm1002 = vcmp.gt.f32.partialorder %v998, 0.0
    %v1003 = vmul.f32 %v995, 0.2
    %v1004 = vmul.f32 %v998, 0.2
    %v1005 = vsel %vm1001, %v995, %v1003
    %v1006 = vsel %vm1002, %v998, %v1004
    %v1007 = vpack.c.bf16 %v1006, %v1005
    %v1008 = vld [vmem:[#allocation8] sm:$0xf]
    %v1009 = vld [vmem:[#allocation8 + $0x4] sm:$0xf]
    %v1010 = vld [vmem:[#allocation8 + $0x8] sm:$0xf]
    %v1011 = vld [vmem:[#allocation8 + $0xc] sm:$0xf]
    %v1012 = vld [vmem:[#allocation8 + $0x10] sm:$0xf]
    %v1013 = vld [vmem:[#allocation8 + $0x14] sm:$0xf]
    %v1014 = vld [vmem:[#allocation8 + $0x18] sm:$0xf]
    %v1015 = vld [vmem:[#allocation8 + $0x1c] sm:$0xf]
    %v1016 = vld [vmem:[#allocation8 + $0x20] sm:$0xf]
    %v1017 = vld [vmem:[#allocation8 + $0x24] sm:$0xf]
    %v1018 = vld [vmem:[#allocation8 + $0x28] sm:$0xf]
    %v1019 = vld [vmem:[#allocation8 + $0x2c] sm:$0xf]
    %v1020 = vld [vmem:[#allocation8 + $0x30] sm:$0xf]
    %v1021 = vld [vmem:[#allocation8 + $0x34] sm:$0xf]
    %v1022 = vld [vmem:[#allocation8 + $0x38] sm:$0xf]
    %v1023 = vld [vmem:[#allocation8 + $0x3c] sm:$0xf]
    %v1024 = vld [vmem:[%s8] sm:$0x1]
    %v1026 = vlaneseq
    %v1027 = vshrl.u32 %v1026, 7
    %v1028 = vsub.s32 0, %v1027
    %v1029 = vrot.slane %v1024, %v1028
    %v1047 = vunpack.c.l.b16 %v1008
    %v1048 = vunpack.c.l.b16 %v1009
    %v1049 = vunpack.c.l.b16 %v1010
    %v1050 = vunpack.c.l.b16 %v1011
    %v1051 = vunpack.c.l.b16 %v1012
    %v1052 = vunpack.c.l.b16 %v1013
    %v1053 = vunpack.c.l.b16 %v1014
    %v1054 = vunpack.c.l.b16 %v1015
    %v1055 = vunpack.c.l.b16 %v1016
    %v1056 = vunpack.c.l.b16 %v1017
    %v1057 = vunpack.c.l.b16 %v1018
    %v1058 = vunpack.c.l.b16 %v1019
    %v1059 = vunpack.c.l.b16 %v1020
    %v1060 = vunpack.c.l.b16 %v1021
    %v1061 = vunpack.c.l.b16 %v1022
    %v1062 = vunpack.c.l.b16 %v1023
    %v1063 = vpack.c.b16 %v1048, %v1047
    %v1064 = vpack.c.b16 %v1050, %v1049
    %v1065 = vpack.c.b16 %v1052, %v1051
    %v1066 = vpack.c.b16 %v1054, %v1053
    %v1067 = vpack.c.b16 %v1056, %v1055
    %v1068 = vpack.c.b16 %v1058, %v1057
    %v1069 = vpack.c.b16 %v1060, %v1059
    %v1070 = vpack.c.b16 %v1062, %v1061
    %1079 = vmatprep.subr.bf16.mxu0 0
    %1080 = vmatpush1.bf16.msra.mxu0 %v1063
    %1081 = vmatprep.subr.bf16.mxu0 0
    %1082 = vmatpush1.bf16.msra.mxu0 %v1064
    %1083 = vmatprep.subr.bf16.mxu0 0
    %1084 = vmatpush1.bf16.msra.mxu0 %v1065
    %1085 = vmatprep.subr.bf16.mxu0 0
    %1086 = vmatpush1.bf16.msra.mxu0 %v1066
    %1087 = vmatprep.subr.bf16.mxu0 0
    %1088 = vmatpush1.bf16.msra.mxu0 %v1067
    %1089 = vmatprep.subr.bf16.mxu0 0
    %1090 = vmatpush1.bf16.msra.mxu0 %v1068
    %1091 = vmatprep.subr.bf16.mxu0 0
    %1092 = vmatpush1.bf16.msra.mxu0 %v1069
    %1093 = vmatprep.subr.bf16.mxu0 0
    %1094 = vmatpush1.bf16.msra.mxu0 %v1070
    %1095 = vmatprep.subr.bf16.mxu0 0
    %1096 = vmatpush1.bf16.msra.mxu0 0
    %1097 = vmatprep.subr.bf16.mxu0 0
    %1098 = vmatpush1.bf16.msra.mxu0 0
    %1099 = vmatprep.subr.bf16.mxu0 0
    %1100 = vmatpush1.bf16.msra.mxu0 0
    %1101 = vmatprep.subr.bf16.mxu0 0
    %1102 = vmatpush1.bf16.msra.mxu0 0
    %1103 = vmatprep.subr.bf16.mxu0 0
    %1104 = vmatpush1.bf16.msra.mxu0 0
    %1105 = vmatprep.subr.bf16.mxu0 0
    %1106 = vmatpush1.bf16.msra.mxu0 0
    %1107 = vmatprep.subr.bf16.mxu0 0
    %1108 = vmatpush1.bf16.msra.mxu0 0
    %1109 = vmatprep.subr.bf16.mxu0 0
    %1110 = vmatpush1.bf16.msra.mxu0 0
    %1111 = vmatprep.mubr.bf16.mxu0 0
    %1112 = vmatmul.mubr.bf16.gmra.mrb[0].mxu0 %v1007
    %v1113 = vpop.f32.mrb[0].mxu0
    %v1114 = vadd.f32 %v1029, %v1113
    %v1115 = vpop.f32.mrb[0].mxu0
    %v1116 = vpop.f32.mrb[0].mxu0
    %v1117 = vadd.f32 %v1029, %v1116
    %v1118 = vpop.f32.mrb[0].mxu0
    %1119 = vdwg.mxu0
    %vm1120 = vcmp.gt.f32.partialorder %v1114, 0.0
    %vm1121 = vcmp.gt.f32.partialorder %v1117, 0.0
    %v1122 = vmul.f32 %v1114, 0.2
    %v1123 = vmul.f32 %v1117, 0.2
    %v1124 = vsel %vm1120, %v1114, %v1122
    %v1125 = vsel %vm1121, %v1117, %v1123
    %v1126 = vld [vmem:[%s9] sm:$0x1]
    %v1128 = vlaneseq
    %v1129 = vshrl.u32 %v1128, 7
    %v1130 = vsub.s32 0, %v1129
    %v1131 = vrot.slane %v1126, %v1130
    %v1133 = vmul.f32 %v1124, %v1131
    %v1134 = vmul.f32 %v1125, %v1131
    %1135 = vadd.xlane.f32.xlu0 %v1133
    %v1136 = vpop.xlane.xlu0 %1135
    %1137 = vadd.xlane.f32.xlu0 %v1134
    %v1138 = vpop.xlane.xlu0 %1137
    %v1139 = vld [vmem:[#allocation2] sm:$0x1]
    %v1141 = vlaneseq
    %v1142 = vshrl.u32 %v1141, 7
    %v1143 = vsub.s32 0, %v1142
    %v1144 = vrot.slane %v1139, %v1143
    %v1146 = vadd.f32 %v1136, %v1144
    %v1147 = vadd.f32 %v1138, %v1144
    %v1148 = vsub.f32 0.0, %v1146
    %v1149 = vsub.f32 0.0, %v1147
    %v1150 = vmul.f32 %v1148, 1.442695
    %v1151 = vpow.pop %v1150
    %v1152 = vmul.f32 %v1149, 1.442695
    %v1153 = vpow.pop %v1152
    %v1154 = vadd.f32 %v1151, 1.0
    %v1155 = vadd.f32 %v1153, 1.0
    %v1156 = vrcp.pop %v1154
    %v1157 = vrcp.pop %v1155
    %vm1158 = vcmask 7168
    %1159 = vst.msk [vmem:[%s11] sm:$0xff] %vm1158, %v1156
    %1160 = vst.msk [vmem:[%s11 + $0x8] sm:$0xff] %vm1158, %v1157
    // Predicated region
    $region62: #{tpu_custom_call.1} parent=1 // pred_check
      _
    $region63: #{tpu_custom_call.1} parent=1 // pred_check_branch
      %1162 = sbr.rel (0) target = $region65
    $region64: #{tpu_custom_call.1} parent=1 // pred_region
      _
    $region65: #{tpu_custom_call.1} parent=1 // pred_fallthru
      _
    // Predicated region
    $region66: #{tpu_custom_call.1} parent=1 // pred_check
      _
    $region67: #{tpu_custom_call.1} parent=1 // pred_check_branch
      %1164 = sbr.rel (0) target = $region69
    $region68: #{tpu_custom_call.1} parent=1 // pred_region
      _
    $region69: #{tpu_custom_call.1} parent=1 // pred_fallthru
      _
    %1165 = vsyncpa [#allocation4], 1
    %1166 = vsyncpa [#allocation6], 1
    %1167 = vsyncpa [#allocation9], 1

</llo_original>
